<compile_context>
chip_gen: v7x
topology: tpu7x:2x2x1
jax: 0.10.0
libtpu: 0.0.40
codegen_flags: <defaults>
</compile_context>

<pallas_src>
import numpy as np
import jax
import jax.numpy as jnp
from jax.experimental import pallas as pl
from jax.experimental.pallas import tpu as pltpu


def _round_up(x, m):
    return (x + m - 1) // m * m


def _pick_tile_m(hw, cap=2048):
    """Largest multiple-of-8 divisor of hw that is <= cap.

    Because tile_m divides Hp*Wp, every M-tile lies entirely inside one
    (batch, upper/surface) segment of the final row layout."""
    best = 0
    for t in range(8, min(hw, cap) + 1, 8):
        if hw % t == 0:
            best = t
    return best


# ---------------------------------------------------------------------------
# Pallas kernel: one M-tile of patches x the segment's (K, N) weight
# ---------------------------------------------------------------------------
def _patch_embed_kernel(seg_ref, blk3_ref, blk2_ref,
                        p3_ref, w3_ref, b3_ref,
                        p2_ref, w2_ref, b2_ref,
                        o_ref):
    # blk*_refs are only consumed by the index_maps.
    del blk3_ref, blk2_ref
    seg = seg_ref[pl.program_id(0)]

    @pl.when(seg == 0)                       # pressure-level (Conv3d) tile
    def _():
        acc = jnp.dot(p3_ref[...], w3_ref[...],
                      preferred_element_type=jnp.float32)
        o_ref[...] = (acc + b3_ref[...]).astype(o_ref.dtype)

    @pl.when(seg == 1)                       # surface (Conv2d) tile
    def _():
        acc = jnp.dot(p2_ref[...], w2_ref[...],
                      preferred_element_type=jnp.float32)
        o_ref[...] = (acc + b2_ref[...]).astype(o_ref.dtype)


def fused_patch_embed(p3, w3, b3, p2, w2, b2, *,
                      B, Zp, Hp, Wp, dim,
                      tile_m_cap=2048, out_dtype=jnp.bfloat16):
    """Both projections in one pallas_call, written straight into the final
    (B*(Zp+1)*Hp*Wp, dim) row order.

      p3: (B*Zp*Hp*Wp, K3) bf16 pressure-level patches, (b, zp, hp, wp) order
      p2: (B*Hp*Wp,   K2) bf16 surface patches,         (b, hp, wp) order
      w3: (K3, dim), w2: (K2, dim), b3/b2: (dim,)
    """
    M3, K3 = p3.shape
    M2, K2 = p2.shape
    assert M3 == B * Zp * Hp * Wp and M2 == B * Hp * Wp
    assert w3.shape == (K3, dim) and w2.shape == (K2, dim)

    hw = Hp * Wp
    tile_m = _pick_tile_m(hw, tile_m_cap)
    if tile_m == 0:
        # TODO(synk): pad Hp*Wp (and mask the tail tile) when it has no
        # multiple-of-8 divisor; not needed for Pangu (181*360) or the tests.
        raise NotImplementedError("Hp*Wp must have a multiple-of-8 divisor")

    # Lane width: full dim when >= 128 (legal full-dim block, no pad, no
    # post-slice).  Only small dims pad up to 128 (sliced back below).
    n_out = dim if dim >= 128 else _round_up(dim, 128)

    def prep_w(w):
        if n_out != dim:
            w = jnp.pad(w, ((0, 0), (0, n_out - dim)))
        return w.astype(jnp.bfloat16)

    def prep_b(b):
        b = b.reshape(1, dim).astype(jnp.float32)
        if n_out != dim:
            b = jnp.pad(b, ((0, 0), (0, n_out - dim)))
        return b

    w3p, w2p, b3p, b2p = prep_w(w3), prep_w(w2), prep_b(b3), prep_b(b2)

    # ---- static per-tile schedule (built at trace time) -------------------
    tiles_up = (Zp * hw) // tile_m      # upper tiles per batch
    tiles_sf = hw // tile_m             # surface tiles per batch
    n_tiles = B * (tiles_up + tiles_sf)
    seg = np.empty((n_tiles,), np.int32)    # 0 = pressure-level, 1 = surface
    blk3 = np.empty((n_tiles,), np.int32)   # block index into p3
    blk2 = np.empty((n_tiles,), np.int32)   # block index into p2
    j3 = j2 = last3 = last2 = 0
    t = 0
    for b in range(B):
        for _ in range(tiles_up):
            seg[t], blk3[t], blk2[t] = 0, j3, last2
            last3 = j3
            j3 += 1
            t += 1
        for _ in range(tiles_sf):
            seg[t], blk3[t], blk2[t] = 1, last3, j2
            last2 = j2
            j2 += 1
            t += 1
    # Repeating the inactive segment's previous block index makes Pallas skip
    # that input's DMA for the step (unchanged block index => no re-fetch).

    m_total = B * (Zp + 1) * hw

    # Double-buffered VMEM footprint + headroom, capped at half physical VMEM
    # so the same tiling is valid on v7x (64 MiB) as well as v5e/v6e (128 MiB).
    vmem_bytes = (2 * tile_m * (K3 + K2) * 2                       # patch tiles
                  + 2 * tile_m * n_out * np.dtype(out_dtype).itemsize  # out tile
                  + 2 * (K3 + K2) * n_out * 2                      # weights
                  + 2 * 2 * n_out * 4)                             # biases
    try:
        vmem_cap = pltpu.get_tpu_info().vmem_capacity_bytes // 2
    except Exception:
        vmem_cap = 32 << 20
    vmem_limit = int(min(max(4 * vmem_bytes, 8 << 20), vmem_cap))

    out = pl.pallas_call(
        _patch_embed_kernel,
        out_shape=jax.ShapeDtypeStruct((m_total, n_out), out_dtype),
        grid_spec=pltpu.PrefetchScalarGridSpec(
            num_scalar_prefetch=3,
            grid=(n_tiles,),
            in_specs=[
                pl.BlockSpec((tile_m, K3), lambda i, s, u3, u2: (u3[i], 0)),
                pl.BlockSpec((K3, n_out),  lambda i, s, u3, u2: (0, 0)),
                pl.BlockSpec((1, n_out),   lambda i, s, u3, u2: (0, 0)),
                pl.BlockSpec((tile_m, K2), lambda i, s, u3, u2: (u2[i], 0)),
                pl.BlockSpec((K2, n_out),  lambda i, s, u3, u2: (0, 0)),
                pl.BlockSpec((1, n_out),   lambda i, s, u3, u2: (0, 0)),
            ],
            out_specs=pl.BlockSpec((tile_m, n_out),
                                   lambda i, s, u3, u2: (i, 0)),
        ),
        compiler_params=pltpu.CompilerParams(
            dimension_semantics=("parallel",),
            vmem_limit_bytes=vmem_limit,
        ),
    )(jnp.asarray(seg), jnp.asarray(blk3), jnp.asarray(blk2),
      p3, w3p, b3p, p2, w2p, b2p)

    if n_out != dim:
        out = out[:, :dim]          # only taken for small dims (< 128)
    return out


# ---------------------------------------------------------------------------
# Glue: patch extraction (stride == kernel conv -> non-overlapping patches).
# Writes bf16 directly so the transpose materializes half the bytes.
# ---------------------------------------------------------------------------
def extract_patches_3d(x, patch, dtype=jnp.bfloat16):
    B, C, Z, H, W = x.shape
    pz, ph, pw = patch
    Zp, Hp, Wp = Z // pz, H // ph, W // pw
    x = x.reshape(B, C, Zp, pz, Hp, ph, Wp, pw)
    x = x.transpose(0, 2, 4, 6, 1, 3, 5, 7)   # (B, Zp, Hp, Wp, C, pz, ph, pw)
    x = x.reshape(B * Zp * Hp * Wp, C * pz * ph * pw)
    return x.astype(dtype), (B, Zp, Hp, Wp)


def extract_patches_2d(x, patch, dtype=jnp.bfloat16):
    B, C, H, W = x.shape
    ph, pw = patch
    Hp, Wp = H // ph, W // pw
    x = x.reshape(B, C, Hp, ph, Wp, pw)
    x = x.transpose(0, 2, 4, 1, 3, 5)          # (B, Hp, Wp, C, ph, pw)
    x = x.reshape(B * Hp * Wp, C * ph * pw)
    return x.astype(dtype), (B, Hp, Wp)


# ---------------------------------------------------------------------------
# Forward pass
# ---------------------------------------------------------------------------
def patch_embedding_forward(params, x3d, x_surface, patch_size, dim, *,
                            tile_m_cap=2048):
    pz, ph, pw = patch_size
    # F.pad(..., (0,0,0,0,0,0)) / F.pad(..., (0,0,0,0)) are no-ops (zero pad).

    # 3-D (pressure-level) stride==kernel Conv3d -> patch matmul.
    p3, (B, Zp, Hp, Wp) = extract_patches_3d(x3d, patch_size)

    # Surface: channel-concat the static masks, then Conv2d -> patch matmul.
    # (land_mask / soil_type / topography are static params: uploaded once.)
    surf = jnp.concatenate(
        [x_surface, params["land_mask"], params["soil_type"],
         params["topography"]], axis=1)                     # (B, 7, H, W)
    p2, (_, Hp2, Wp2) = extract_patches_2d(surf, (ph, pw))
    assert (Hp2, Wp2) == (Hp, Wp)

    w3 = params["conv_w"].reshape(dim, -1).T                # (5*pz*ph*pw, dim)
    w2 = params["conv_surface_w"].reshape(dim, -1).T        # (7*ph*pw, dim)

    # TODO(synk): the reference torch.cat((input, input_surface), dim=1) mixes
    # a 5-D and a 4-D tensor (would raise in PyTorch); we implement the
    # intended Pangu semantics -- the surface embedding is appended as one
    # extra depth slice before permute + view -- and the kernel writes that
    # final (B, (Zp+1)*Hp*Wp, dim) row order directly (no post concat/slice).
    out = fused_patch_embed(
        p3, w3, params["conv_b"], p2, w2, params["conv_surface_b"],
        B=B, Zp=Zp, Hp=Hp, Wp=Wp, dim=dim, tile_m_cap=tile_m_cap)
    return out.reshape(B, (Zp + 1) * Hp * Wp, dim)


# ---------------------------------------------------------------------------
# Deterministic parameter init (synthetic, shapes from the module's __init__)
# ---------------------------------------------------------------------------
def init_params(key, patch_size, dim, B, H, W):
    pz, ph, pw = patch_size
    ks = jax.random.split(key, 7)
    s3 = 1.0 / jnp.sqrt(5.0 * pz * ph * pw)
    s2 = 1.0 / jnp.sqrt(7.0 * ph * pw)
    return {
        "conv_w": jax.random.normal(ks[0], (dim, 5, pz, ph, pw), jnp.float32) * s3,
        "conv_b": jax.random.normal(ks[1], (dim,), jnp.float32) * s3,
        "conv_surface_w": jax.random.normal(ks[2], (dim, 7, ph, pw), jnp.float32) * s2,
        "conv_surface_b": jax.random.normal(ks[3], (dim,), jnp.float32) * s2,
        # static surface constants (land mask / soil type / topography)
        "land_mask": jax.random.normal(ks[4], (B, 1, H, W), jnp.float32),
        "soil_type": jax.random.normal(ks[5], (B, 1, H, W), jnp.float32),
        "topography": jax.random.normal(ks[6], (B, 1, H, W), jnp.float32),
    }


if __name__ == "__main__":
    patch_size = (2, 4, 4)
    dim = 32
    B, Z, H, W = 2, 4, 16, 16

    key = jax.random.PRNGKey(0)
    k_in, k_surf, k_par = jax.random.split(key, 3)
    x3d = jax.random.normal(k_in, (B, 5, Z, H, W), jnp.float32)
    x_surface = jax.random.normal(k_surf, (B, 4, H, W), jnp.float32)
    params = init_params(k_par, patch_size, dim, B, H, W)

    fwd = jax.jit(
        lambda p, a, b: patch_embedding_forward(p, a, b, patch_size, dim))
    out = jax.block_until_ready(fwd(params, x3d, x_surface))

    # Pure-JAX f32 reference of the whole forward (kernel runs bf16 operands,
    # f32 accumulation, bf16 store -> loosened tolerance).
    p3_f, (_, Zp, Hp, Wp) = extract_patches_3d(x3d, patch_size,
                                               dtype=jnp.float32)
    ref_upper = (p3_f @ params["conv_w"].reshape(dim, -1).T
                 + params["conv_b"]).reshape(B, Zp, Hp, Wp, dim)
    surf = jnp.concatenate([x_surface, params["land_mask"],
                            params["soil_type"], params["topography"]], axis=1)
    p2_f, _ = extract_patches_2d(surf, patch_size[1:], dtype=jnp.float32)
    ref_surf = (p2_f @ params["conv_surface_w"].reshape(dim, -1).T
                + params["conv_surface_b"]).reshape(B, 1, Hp, Wp, dim)
    ref = jnp.concatenate([ref_upper, ref_surf], axis=1).reshape(B, -1, dim)

    assert out.shape == (B, (Zp + 1) * Hp * Wp, dim), out.shape
    assert out.dtype == jnp.bfloat16, out.dtype
    out_f = out.astype(jnp.float32)
    err = float(jnp.max(jnp.abs(out_f - ref)))
    assert jnp.allclose(out_f, ref, atol=4e-2, rtol=4e-2), err
    print("KERNEL_OK")
</pallas_src>

<mosaic_0001>
module attributes {stable_mosaic.version = 11 : i64} {
  func.func @_patch_embed_kernel(%arg0: i32, %arg1: memref<6xi32, #tpu.memory_space<smem>>, %arg2: memref<6xi32, #tpu.memory_space<smem>>, %arg3: memref<6xi32, #tpu.memory_space<smem>>, %arg4: memref<16x160xbf16, #tpu.memory_space<vmem>>, %arg5: memref<160x128xbf16, #tpu.memory_space<vmem>>, %arg6: memref<1x128xf32, #tpu.memory_space<vmem>>, %arg7: memref<16x112xbf16, #tpu.memory_space<vmem>>, %arg8: memref<112x128xbf16, #tpu.memory_space<vmem>>, %arg9: memref<1x128xf32, #tpu.memory_space<vmem>>, %arg10: memref<16x128xbf16, #tpu.memory_space<vmem>>) attributes {dimension_semantics = [#tpu.dimension_semantics<parallel>], iteration_bounds = array<i64: 6>, scalar_prefetch = 3 : i64, scratch_operands = 0 : i64, tpu.core_type = #tpu.core_type<tc>, window_params = [{transform_indices = @transform_0, window_bounds = array<i64: 16, 160>}, {pipeline_mode = #tpu.pipeline_mode<synchronous>, transform_indices = @transform_1, window_bounds = array<i64: 160, 128>}, {pipeline_mode = #tpu.pipeline_mode<synchronous>, transform_indices = @transform_2, window_bounds = array<i64: 1, 128>}, {transform_indices = @transform_3, window_bounds = array<i64: 16, 112>}, {pipeline_mode = #tpu.pipeline_mode<synchronous>, transform_indices = @transform_4, window_bounds = array<i64: 112, 128>}, {pipeline_mode = #tpu.pipeline_mode<synchronous>, transform_indices = @transform_5, window_bounds = array<i64: 1, 128>}, {transform_indices = @transform_6, window_bounds = array<i64: 16, 128>}]} {
    %0 = arith.index_cast %arg0 : i32 to index
    %1 = memref.load %arg1[%0] : memref<6xi32, #tpu.memory_space<smem>>
    %c0_i32 = arith.constant 0 : i32
    %2 = arith.cmpi eq, %1, %c0_i32 : i32
    %3 = arith.extui %2 : i1 to i32
    %c0_i32_0 = arith.constant 0 : i32
    %4 = arith.cmpi ne, %3, %c0_i32_0 : i32
    scf.if %4 {
      %c0 = arith.constant 0 : index
      %c0_2 = arith.constant 0 : index
      %8 = vector.load %arg4[%c0, %c0_2] : memref<16x160xbf16, #tpu.memory_space<vmem>>, vector<16x160xbf16>
      %c0_3 = arith.constant 0 : index
      %c0_4 = arith.constant 0 : index
      %9 = vector.load %arg5[%c0_3, %c0_4] : memref<160x128xbf16, #tpu.memory_space<vmem>>, vector<160x128xbf16>
      %cst = arith.constant dense<0.000000e+00> : vector<16x128xf32>
      %10 = tpu.matmul %8, %9, %cst {dimension_numbers = #tpu.dot_dimension_numbers<[1], [0], [0], [1], [0, 0, 1, 1], [], []>} : vector<16x160xbf16>, vector<160x128xbf16>, vector<16x128xf32> -> vector<16x128xf32>
      %c0_5 = arith.constant 0 : index
      %c0_6 = arith.constant 0 : index
      %11 = vector.load %arg6[%c0_5, %c0_6] : memref<1x128xf32, #tpu.memory_space<vmem>>, vector<1x128xf32>
      %12 = vector.broadcast %11 : vector<1x128xf32> to vector<16x128xf32>
      %13 = arith.addf %10, %12 : vector<16x128xf32>
      %14 = arith.truncf %13 : vector<16x128xf32> to vector<16x128xbf16>
      %c0_7 = arith.constant 0 : index
      %c0_8 = arith.constant 0 : index
      %15 = vector.load %arg10[%c0_7, %c0_8] : memref<16x128xbf16, #tpu.memory_space<vmem>>, vector<16x128xbf16>
      tpu.vector_store %arg10[%c0_7, %c0_8], %14 {strides = array<i32>} : memref<16x128xbf16, #tpu.memory_space<vmem>>, vector<16x128xbf16>,
    } else {
    }
    %c1_i32 = arith.constant 1 : i32
    %5 = arith.cmpi eq, %1, %c1_i32 : i32
    %6 = arith.extui %5 : i1 to i32
    %c0_i32_1 = arith.constant 0 : i32
    %7 = arith.cmpi ne, %6, %c0_i32_1 : i32
    scf.if %7 {
      %c0 = arith.constant 0 : index
      %c0_2 = arith.constant 0 : index
      %8 = vector.load %arg7[%c0, %c0_2] : memref<16x112xbf16, #tpu.memory_space<vmem>>, vector<16x112xbf16>
      %c0_3 = arith.constant 0 : index
      %c0_4 = arith.constant 0 : index
      %9 = vector.load %arg8[%c0_3, %c0_4] : memref<112x128xbf16, #tpu.memory_space<vmem>>, vector<112x128xbf16>
      %cst = arith.constant dense<0.000000e+00> : vector<16x128xf32>
      %10 = tpu.matmul %8, %9, %cst {dimension_numbers = #tpu.dot_dimension_numbers<[1], [0], [0], [1], [0, 0, 1, 1], [], []>} : vector<16x112xbf16>, vector<112x128xbf16>, vector<16x128xf32> -> vector<16x128xf32>
      %c0_5 = arith.constant 0 : index
      %c0_6 = arith.constant 0 : index
      %11 = vector.load %arg9[%c0_5, %c0_6] : memref<1x128xf32, #tpu.memory_space<vmem>>, vector<1x128xf32>
      %12 = vector.broadcast %11 : vector<1x128xf32> to vector<16x128xf32>
      %13 = arith.addf %10, %12 : vector<16x128xf32>
      %14 = arith.truncf %13 : vector<16x128xf32> to vector<16x128xbf16>
      %c0_7 = arith.constant 0 : index
      %c0_8 = arith.constant 0 : index
      %15 = vector.load %arg10[%c0_7, %c0_8] : memref<16x128xbf16, #tpu.memory_space<vmem>>, vector<16x128xbf16>
      tpu.vector_store %arg10[%c0_7, %c0_8], %14 {strides = array<i32>} : memref<16x128xbf16, #tpu.memory_space<vmem>>, vector<16x128xbf16>,
    } else {
    }
    return
  }
  func.func @transform_0(%arg0: i32, %arg1: memref<6xi32, #tpu.memory_space<smem>>, %arg2: memref<6xi32, #tpu.memory_space<smem>>, %arg3: memref<6xi32, #tpu.memory_space<smem>>) -> (i32, i32) {
    %0 = arith.index_cast %arg0 : i32 to index
    %1 = memref.load %arg2[%0] : memref<6xi32, #tpu.memory_space<smem>>
    %c0_i32 = arith.constant 0 : i32
    %c0_i32_0 = arith.constant 0 : i32
    return %1, %c0_i32 : i32, i32
  }
  func.func @transform_1(%arg0: i32, %arg1: memref<6xi32, #tpu.memory_space<smem>>, %arg2: memref<6xi32, #tpu.memory_space<smem>>, %arg3: memref<6xi32, #tpu.memory_space<smem>>) -> (i32, i32) {
    %c0_i32 = arith.constant 0 : i32
    %c0_i32_0 = arith.constant 0 : i32
    %c0_i32_1 = arith.constant 0 : i32
    return %c0_i32, %c0_i32_0 : i32, i32
  }
  func.func @transform_2(%arg0: i32, %arg1: memref<6xi32, #tpu.memory_space<smem>>, %arg2: memref<6xi32, #tpu.memory_space<smem>>, %arg3: memref<6xi32, #tpu.memory_space<smem>>) -> (i32, i32) {
    %c0_i32 = arith.constant 0 : i32
    %c0_i32_0 = arith.constant 0 : i32
    %c0_i32_1 = arith.constant 0 : i32
    return %c0_i32, %c0_i32_0 : i32, i32
  }
  func.func @transform_3(%arg0: i32, %arg1: memref<6xi32, #tpu.memory_space<smem>>, %arg2: memref<6xi32, #tpu.memory_space<smem>>, %arg3: memref<6xi32, #tpu.memory_space<smem>>) -> (i32, i32) {
    %0 = arith.index_cast %arg0 : i32 to index
    %1 = memref.load %arg3[%0] : memref<6xi32, #tpu.memory_space<smem>>
    %c0_i32 = arith.constant 0 : i32
    %c0_i32_0 = arith.constant 0 : i32
    return %1, %c0_i32 : i32, i32
  }
  func.func @transform_4(%arg0: i32, %arg1: memref<6xi32, #tpu.memory_space<smem>>, %arg2: memref<6xi32, #tpu.memory_space<smem>>, %arg3: memref<6xi32, #tpu.memory_space<smem>>) -> (i32, i32) {
    %c0_i32 = arith.constant 0 : i32
    %c0_i32_0 = arith.constant 0 : i32
    %c0_i32_1 = arith.constant 0 : i32
    return %c0_i32, %c0_i32_0 : i32, i32
  }
  func.func @transform_5(%arg0: i32, %arg1: memref<6xi32, #tpu.memory_space<smem>>, %arg2: memref<6xi32, #tpu.memory_space<smem>>, %arg3: memref<6xi32, #tpu.memory_space<smem>>) -> (i32, i32) {
    %c0_i32 = arith.constant 0 : i32
    %c0_i32_0 = arith.constant 0 : i32
    %c0_i32_1 = arith.constant 0 : i32
    return %c0_i32, %c0_i32_0 : i32, i32
  }
  func.func @transform_6(%arg0: i32, %arg1: memref<6xi32, #tpu.memory_space<smem>>, %arg2: memref<6xi32, #tpu.memory_space<smem>>, %arg3: memref<6xi32, #tpu.memory_space<smem>>) -> (i32, i32) {
    %c0_i32 = arith.constant 0 : i32
    %c0_i32_0 = arith.constant 0 : i32
    return %arg0, %c0_i32 : i32, i32
  }
}

</mosaic_0001>

<llo_original>
// kernel: _lambda_.1
$region0: #{_lambda_.1}
  #allocation0 [shape = 'u32[]', space=smem, size = 0x4, offset = 0x4, fixed_abs, tag = 'smem constant byte address 0x4 - core index']
  #allocation1 [shape = 'u32[144,128]{1,0:T(1,128)}', space=vmem, size = 0x12000, scoped, tag = 'internal scratch']
  #allocation2 [shape = 's32[1]{0}', space=sflag, size = 0x4, scoped, tag = 'scoped memory for _lambda_.1']
  #allocation3 [shape = 'u8[512]{0}', space=smem, size = 0x200, scoped, tag = 'prefetched SMEM operand 0']
  #allocation4 [shape = 'u8[512]{0}', space=smem, size = 0x200, scoped, tag = 'prefetched SMEM operand 1']
  #allocation5 [shape = 'u8[512]{0}', space=smem, size = 0x200, scoped, tag = 'prefetched SMEM operand 2']
  %s0 = inlined_call_operand.vmem [shape: s32[6], index: 0, kind: input, shape index: {}]
  %s1 = inlined_call_operand.vmem [shape: s32[6], index: 1, kind: input, shape index: {}]
  %s2 = inlined_call_operand.vmem [shape: s32[6], index: 2, kind: input, shape index: {}]
  %s3 = inlined_call_operand.vmem [shape: bf16[64,160], index: 3, kind: input, shape index: {}]
  %s4 = inlined_call_operand.vmem [shape: bf16[160,128], index: 4, kind: input, shape index: {}]
  %s5 = inlined_call_operand.vmem [shape: f32[1,128], index: 5, kind: input, shape index: {}]
  %s6 = inlined_call_operand.vmem [shape: bf16[32,112], index: 6, kind: input, shape index: {}]
  %s7 = inlined_call_operand.vmem [shape: bf16[112,128], index: 7, kind: input, shape index: {}]
  %s8 = inlined_call_operand.vmem [shape: f32[1,128], index: 8, kind: input, shape index: {}]
  %s9 = inlined_call_operand.vmem [shape: bf16[96,128], index: 9, kind: output, shape index: {}]
  %s10 = sld [smem:[#allocation0]]
  $region65: #{_lambda_.1} parent=0
    _
  %s12 = ssub.s32 1, %s10
  %s13 = scalar_select 0, %s12, %s10
  %s14 = sshll.u32 %s0, 4
  %s15 = int_to_ptr.vmem [resolvable:$true] %s14
  %17 = dma.vmem_to_smem %s15, 16, [#allocation3], [#allocation2]
  %s18 = sshll.u32 %s1, 4
  %s19 = int_to_ptr.vmem [resolvable:$true] %s18
  %21 = dma.vmem_to_smem %s19, 16, [#allocation4], [#allocation2]
  %s22 = sshll.u32 %s2, 4
  %s23 = int_to_ptr.vmem [resolvable:$true] %s22
  %25 = dma.vmem_to_smem %s23, 16, [#allocation5], [#allocation2]
  %26 = dma.done [#allocation2], 48
  %27 = sfence
  loop: start=0, step=1, limit=8
  $region2: #{_lambda_.1} parent=0 // loop_pre_header
    _
  $region3: #{_lambda_.1} parent=0 // loop_header
    %s29 = sphi 0, %s33
    %p30 = scmp.ge.s32.totalorder %s29, 8
    %s41 = sphi 0, %s43
    %s44 = sphi 0, %s41
    %s45 = sphi 0, %s44
    %s61 = sphi 0, %s45
    %s65 = sphi 0, %s65
    %s67 = sphi 0, %s65
    %s68 = sphi 0, %s67
    %s82 = sphi 0, %s68
    %s86 = sphi 0, %s86
    %s88 = sphi 0, %s86
    %s89 = sphi 0, %s88
    %s103 = sphi 0, %s89
    %s111 = sphi 0, %s113
    %s114 = sphi 0, %s111
    %s115 = sphi 0, %s114
    %s131 = sphi 0, %s115
    %s135 = sphi 0, %s135
    %s137 = sphi 0, %s135
    %s138 = sphi 0, %s137
    %s152 = sphi 0, %s138
    %s156 = sphi 0, %s156
    %s158 = sphi 0, %s156
    %s159 = sphi 0, %s158
    %s173 = sphi 0, %s159
    %s179 = sphi 0, %s181
    %s182 = sphi 0, %s179
    %s183 = sphi 0, %s182
    %s199 = sphi 0, %s183
  $region4: #{_lambda_.1} parent=0 // loop_header_branch
    %32 = sbr.rel (%p30) target = $region8
  $region5: #{_lambda_.1} parent=0 // loop_body
    %s34 = ssub.s32 %s29, 1
    %s35 = ssub.s32 %s29, 2
    %s36 = sadd.s32 %s29, 1
    %s37 = sld [smem:[#allocation4 + %s29]]
    %s38 = sld [smem:[#allocation4 + %s36]]
    %s39 = ssub.s32 %s37, %s38
    %p40 = scmp.eq.s32.totalorder %s39, 0
    %s42 = sadd.s32 %s41, 1
    %s43 = scalar_select %p40, %s41, %s42
    %p46 = pneg %p40
    %p47 = scmp.eq.s32.totalorder %s29, 5
    %p48 = por %p46, %p47
    %p49 = scmp.ne.s32.totalorder %s41, %s44
    %p50 = scmp.eq.s32.totalorder %s29, 0
    %p51 = por %p49, %p50
    %p52 = scmp.ne.s32.totalorder %s41, %s44
    %p53 = scmp.eq.s32.totalorder %s34, 5
    %p54 = por %p52, %p53
    %p55 = scmp.ne.s32.totalorder %s44, %s45
    %p56 = scmp.eq.s32.totalorder %s34, 0
    %p57 = por %p55, %p56
    %p58 = scmp.ne.s32.totalorder %s44, %s45
    %p59 = scmp.eq.s32.totalorder %s35, 5
    %p60 = por %p58, %p59
    %p62 = scmp.ne.s32.totalorder %s45, %s61
    %p63 = scmp.eq.s32.totalorder %s35, 0
    %p64 = por %p62, %p63
    %s66 = sadd.s32 %s65, 1
    %p69 = scmp.eq.s32.totalorder %s29, 5
    %p70 = scmp.ne.s32.totalorder %s65, %s67
    %p71 = scmp.eq.s32.totalorder %s29, 0
    %p72 = por %p70, %p71
    %p73 = scmp.ne.s32.totalorder %s65, %s67
    %p74 = scmp.eq.s32.totalorder %s34, 5
    %p75 = por %p73, %p74
    %p76 = scmp.ne.s32.totalorder %s67, %s68
    %p77 = scmp.eq.s32.totalorder %s34, 0
    %p78 = por %p76, %p77
    %p79 = scmp.ne.s32.totalorder %s67, %s68
    %p80 = scmp.eq.s32.totalorder %s35, 5
    %p81 = por %p79, %p80
    %p83 = scmp.ne.s32.totalorder %s68, %s82
    %p84 = scmp.eq.s32.totalorder %s35, 0
    %p85 = por %p83, %p84
    %s87 = sadd.s32 %s86, 1
    %p90 = scmp.eq.s32.totalorder %s29, 5
    %p91 = scmp.ne.s32.totalorder %s86, %s88
    %p92 = scmp.eq.s32.totalorder %s29, 0
    %p93 = por %p91, %p92
    %p94 = scmp.ne.s32.totalorder %s86, %s88
    %p95 = scmp.eq.s32.totalorder %s34, 5
    %p96 = por %p94, %p95
    %p97 = scmp.ne.s32.totalorder %s88, %s89
    %p98 = scmp.eq.s32.totalorder %s34, 0
    %p99 = por %p97, %p98
    %p100 = scmp.ne.s32.totalorder %s88, %s89
    %p101 = scmp.eq.s32.totalorder %s35, 5
    %p102 = por %p100, %p101
    %p104 = scmp.ne.s32.totalorder %s89, %s103
    %p105 = scmp.eq.s32.totalorder %s35, 0
    %p106 = por %p104, %p105
    %s107 = sld [smem:[#allocation5 + %s29]]
    %s108 = sld [smem:[#allocation5 + %s36]]
    %s109 = ssub.s32 %s107, %s108
    %p110 = scmp.eq.s32.totalorder %s109, 0
    %s112 = sadd.s32 %s111, 1
    %s113 = scalar_select %p110, %s111, %s112
    %p116 = pneg %p110
    %p117 = scmp.eq.s32.totalorder %s29, 5
    %p118 = por %p116, %p117
    %p119 = scmp.ne.s32.totalorder %s111, %s114
    %p120 = scmp.eq.s32.totalorder %s29, 0
    %p121 = por %p119, %p120
    %p122 = scmp.ne.s32.totalorder %s111, %s114
    %p123 = scmp.eq.s32.totalorder %s34, 5
    %p124 = por %p122, %p123
    %p125 = scmp.ne.s32.totalorder %s114, %s115
    %p126 = scmp.eq.s32.totalorder %s34, 0
    %p127 = por %p125, %p126
    %p128 = scmp.ne.s32.totalorder %s114, %s115
    %p129 = scmp.eq.s32.totalorder %s35, 5
    %p130 = por %p128, %p129
    %p132 = scmp.ne.s32.totalorder %s115, %s131
    %p133 = scmp.eq.s32.totalorder %s35, 0
    %p134 = por %p132, %p133
    %s136 = sadd.s32 %s135, 1
    %p139 = scmp.eq.s32.totalorder %s29, 5
    %p140 = scmp.ne.s32.totalorder %s135, %s137
    %p141 = scmp.eq.s32.totalorder %s29, 0
    %p142 = por %p140, %p141
    %p143 = scmp.ne.s32.totalorder %s135, %s137
    %p144 = scmp.eq.s32.totalorder %s34, 5
    %p145 = por %p143, %p144
    %p146 = scmp.ne.s32.totalorder %s137, %s138
    %p147 = scmp.eq.s32.totalorder %s34, 0
    %p148 = por %p146, %p147
    %p149 = scmp.ne.s32.totalorder %s137, %s138
    %p150 = scmp.eq.s32.totalorder %s35, 5
    %p151 = por %p149, %p150
    %p153 = scmp.ne.s32.totalorder %s138, %s152
    %p154 = scmp.eq.s32.totalorder %s35, 0
    %p155 = por %p153, %p154
    %s157 = sadd.s32 %s156, 1
    %p160 = scmp.eq.s32.totalorder %s29, 5
    %p161 = scmp.ne.s32.totalorder %s156, %s158
    %p162 = scmp.eq.s32.totalorder %s29, 0
    %p163 = por %p161, %p162
    %p164 = scmp.ne.s32.totalorder %s156, %s158
    %p165 = scmp.eq.s32.totalorder %s34, 5
    %p166 = por %p164, %p165
    %p167 = scmp.ne.s32.totalorder %s158, %s159
    %p168 = scmp.eq.s32.totalorder %s34, 0
    %p169 = por %p167, %p168
    %p170 = scmp.ne.s32.totalorder %s158, %s159
    %p171 = scmp.eq.s32.totalorder %s35, 5
    %p172 = por %p170, %p171
    %p174 = scmp.ne.s32.totalorder %s159, %s173
    %p175 = scmp.eq.s32.totalorder %s35, 0
    %p176 = por %p174, %p175
    %s177 = ssub.s32 %s29, %s36
    %p178 = scmp.eq.s32.totalorder %s177, 0
    %s180 = sadd.s32 %s179, 1
    %s181 = scalar_select %p178, %s179, %s180
    %p184 = pneg %p178
    %p185 = scmp.eq.s32.totalorder %s29, 5
    %p186 = por %p184, %p185
    %p187 = scmp.ne.s32.totalorder %s179, %s182
    %p188 = scmp.eq.s32.totalorder %s29, 0
    %p189 = por %p187, %p188
    %p190 = scmp.ne.s32.totalorder %s179, %s182
    %p191 = scmp.eq.s32.totalorder %s34, 5
    %p192 = por %p190, %p191
    %p193 = scmp.ne.s32.totalorder %s182, %s183
    %p194 = scmp.eq.s32.totalorder %s34, 0
    %p195 = por %p193, %p194
    %p196 = scmp.ne.s32.totalorder %s182, %s183
    %p197 = scmp.eq.s32.totalorder %s35, 5
    %p198 = por %p196, %p197
    %p200 = scmp.ne.s32.totalorder %s183, %s199
    %p201 = scmp.eq.s32.totalorder %s35, 0
    %p202 = por %p200, %p201
    %p203 = scmp.le.s32.totalorder 1, %s29
    %p204 = scmp.lt.s32.totalorder %s29, 7
    %p205 = pnand %p203, %p204
    %p206 = pneg %p205
    // Predicated region
    $region9: #{_lambda_.1} parent=5 // pred_check
      _
    $region10: #{_lambda_.1} parent=5 // pred_check_branch
      %208 = sbr.rel (%p205) target = $region12
    $region11: #{_lambda_.1} parent=5 // pred_region
      %s209 = ssub.s32 %s29, 1
      // Predicated region
      $region13: #{_lambda_.1} parent=11 // pred_check
        %p210 = pneg %p78
      $region14: #{_lambda_.1} parent=11 // pred_check_branch
        %212 = sbr.rel (%p210) target = $region16
      $region15: #{_lambda_.1} parent=11 // pred_region
        _
      $region16: #{_lambda_.1} parent=11 // pred_fallthru
        _
      // Predicated region
      $region17: #{_lambda_.1} parent=11 // pred_check
        %p213 = pneg %p99
      $region18: #{_lambda_.1} parent=11 // pred_check_branch
        %215 = sbr.rel (%p213) target = $region20
      $region19: #{_lambda_.1} parent=11 // pred_region
        _
      $region20: #{_lambda_.1} parent=11 // pred_fallthru
        _
      // Predicated region
      $region21: #{_lambda_.1} parent=11 // pred_check
        %p216 = pneg %p148
      $region22: #{_lambda_.1} parent=11 // pred_check_branch
        %218 = sbr.rel (%p216) target = $region24
      $region23: #{_lambda_.1} parent=11 // pred_region
        _
      $region24: #{_lambda_.1} parent=11 // pred_fallthru
        _
      // Predicated region
      $region25: #{_lambda_.1} parent=11 // pred_check
        %p219 = pneg %p169
      $region26: #{_lambda_.1} parent=11 // pred_check_branch
        %221 = sbr.rel (%p219) target = $region28
      $region27: #{_lambda_.1} parent=11 // pred_region
        _
      $region28: #{_lambda_.1} parent=11 // pred_fallthru
        _
    $region12: #{_lambda_.1} parent=5 // pred_fallthru
      _
    %p222 = scmp.lt.s32.totalorder %s29, 6
    // Predicated region
    $region29: #{_lambda_.1} parent=5 // pred_check
      %p223 = pneg %p222
    $region30: #{_lambda_.1} parent=5 // pred_check_branch
      %225 = sbr.rel (%p223) target = $region32
    $region31: #{_lambda_.1} parent=5 // pred_region
      // Predicated region
      $region33: #{_lambda_.1} parent=31 // pred_check
        %p226 = pneg %p51
      $region34: #{_lambda_.1} parent=31 // pred_check_branch
        %228 = sbr.rel (%p226) target = $region36
      $region35: #{_lambda_.1} parent=31 // pred_region
        %s229 = sld [smem:[#allocation4 + %s29]]
        %s230 = smul.u32 2, %s229
        %p231 = scmp.lt.s32.totalorder %s230, 7
        %s232 = scalar_select %p231, %s230, 7
        %s233 = smul.addr %s232, 2
        %s234 = smul.addr %s233, 4
        %s235 = scalar_lea.vmem %s3, %s234
        %s236 = sld [smem:[#allocation4 + %s29]]
        %s237 = smul.u32 2, %s236
      $region36: #{_lambda_.1} parent=31 // pred_fallthru
        _
      // Predicated region
      $region37: #{_lambda_.1} parent=31 // pred_check
        %p238 = pneg %p121
      $region38: #{_lambda_.1} parent=31 // pred_check_branch
        %240 = sbr.rel (%p238) target = $region40
      $region39: #{_lambda_.1} parent=31 // pred_region
        %s241 = sld [smem:[#allocation5 + %s29]]
        %s242 = smul.u32 2, %s241
        %p243 = scmp.lt.s32.totalorder %s242, 3
        %s244 = scalar_select %p243, %s242, 3
        %s245 = smul.addr %s244, 4
        %s246 = scalar_lea.vmem %s6, %s245
        %s247 = sld [smem:[#allocation5 + %s29]]
        %s248 = smul.u32 2, %s247
      $region40: #{_lambda_.1} parent=31 // pred_fallthru
        _
    $region32: #{_lambda_.1} parent=5 // pred_fallthru
      _
    %p249 = scmp.le.s32.totalorder 1, %s29
    %p250 = scmp.lt.s32.totalorder %s29, 7
    %p251 = pnand %p249, %p250
    %p252 = pneg %p251
    // Predicated region
    $region41: #{_lambda_.1} parent=5 // pred_check
      _
    $region42: #{_lambda_.1} parent=5 // pred_check_branch
      %254 = sbr.rel (%p251) target = $region44
    $region43: #{_lambda_.1} parent=5 // pred_region
      %s255 = ssub.s32 %s29, 1
      %s256 = sld [smem:[#allocation4 + %s34]]
      %s257 = smul.u32 2, %s256
      %p258 = scmp.lt.s32.totalorder %s257, 7
      %s259 = scalar_select %p258, %s257, 7
      %s260 = smul.addr %s259, 2
      %s261 = smul.addr %s260, 4
      %s262 = scalar_lea.vmem %s3, %s261
      %p263 = pneg %p57
      %p264 = pneg %p54
      %p265 = pneg %p78
      %p266 = pneg %p75
      %p267 = pneg %p99
      %p268 = pneg %p96
      %s269 = sld [smem:[#allocation5 + %s34]]
      %s270 = smul.u32 2, %s269
      %p271 = scmp.lt.s32.totalorder %s270, 3
      %s272 = scalar_select %p271, %s270, 3
      %s273 = smul.addr %s272, 4
      %s274 = scalar_lea.vmem %s6, %s273
      %p275 = pneg %p127
      %p276 = pneg %p124
      %p277 = pneg %p148
      %p278 = pneg %p145
      %p279 = pneg %p169
      %p280 = pneg %p166
      %p281 = pneg %p195
      %p282 = pneg %p192
      %s283 = smul.u32 2, %s34
      %p284 = scmp.lt.s32.totalorder %s283, 11
      %s285 = scalar_select %p284, %s283, 11
      %s286 = smul.addr %s285, 4
      %s287 = scalar_lea.vmem %s9, %s286
      %s288 = sld [smem:[#allocation4 + %s34]]
      %s289 = smul.u32 2, %s288
      %p290 = scmp.lt.s32.totalorder %s289, 7
      %s291 = scalar_select %p290, %s289, 7
      %s292 = smul.addr %s291, 2
      %s293 = smul.addr %s292, 4
      %s294 = scalar_lea.vmem %s3, %s293
      %s295 = sld [smem:[#allocation4 + %s34]]
      %s296 = smul.u32 2, %s295
      %s297 = sld [smem:[#allocation5 + %s34]]
      %s298 = smul.u32 2, %s297
      %p299 = scmp.lt.s32.totalorder %s298, 3
      %s300 = scalar_select %p299, %s298, 3
      %s301 = smul.addr %s300, 4
      %s302 = scalar_lea.vmem %s6, %s301
      %s303 = sld [smem:[#allocation5 + %s34]]
      %s304 = smul.u32 2, %s303
      %s305 = smul.u32 2, %s34
      %p306 = scmp.lt.s32.totalorder %s305, 11
      %s307 = scalar_select %p306, %s305, 11
      %s308 = smul.addr %s307, 4
      %s309 = scalar_lea.vmem %s9, %s308
      %s310 = smul.u32 2, %s34
      %s312 = sld [smem:[#allocation3 + %s34]]
      %p313 = scmp.eq.s32.totalorder %s312, 0
      // Predicated region
      $region45: #{_lambda_.1} parent=43 // pred_check
        %p314 = pneg %p313
      $region46: #{_lambda_.1} parent=43 // pred_check_branch
        %316 = sbr.rel (%p314) target = $region48
      $region47: #{_lambda_.1} parent=43 // pred_region
        %v317 = vld [vmem:[%s294] sm:$0xff]
        %v318 = vld [vmem:[%s294 + $0x8] sm:$0xff]
        %v319 = vld [vmem:[%s4] sm:$0xf]
        %v320 = vld [vmem:[%s4 + $0x4] sm:$0xf]
        %v321 = vld [vmem:[%s4 + $0x8] sm:$0xf]
        %v322 = vld [vmem:[%s4 + $0xc] sm:$0xf]
        %v323 = vld [vmem:[%s4 + $0x10] sm:$0xf]
        %v324 = vld [vmem:[%s4 + $0x14] sm:$0xf]
        %v325 = vld [vmem:[%s4 + $0x18] sm:$0xf]
        %v326 = vld [vmem:[%s4 + $0x1c] sm:$0xf]
        %v327 = vld [vmem:[%s4 + $0x20] sm:$0xf]
        %v328 = vld [vmem:[%s4 + $0x24] sm:$0xf]
        %v329 = vld [vmem:[%s4 + $0x28] sm:$0xf]
        %v330 = vld [vmem:[%s4 + $0x2c] sm:$0xf]
        %v331 = vld [vmem:[%s4 + $0x30] sm:$0xf]
        %v332 = vld [vmem:[%s4 + $0x34] sm:$0xf]
        %v333 = vld [vmem:[%s4 + $0x38] sm:$0xf]
        %v334 = vld [vmem:[%s4 + $0x3c] sm:$0xf]
        %v335 = vld [vmem:[%s4 + $0x40] sm:$0xf]
        %v336 = vld [vmem:[%s4 + $0x44] sm:$0xf]
        %v337 = vld [vmem:[%s4 + $0x48] sm:$0xf]
        %v338 = vld [vmem:[%s4 + $0x4c] sm:$0xf]
        %v339 = vld [vmem:[%s5] sm:$0x1]
        %v341 = vlaneseq
        %v342 = vshrl.u32 %v341, 7
        %v343 = vsub.s32 0, %v342
        %v344 = vrot.slane %v339, %v343
        %v348 = vunpack.c.l.b16 %v317
        %v349 = vunpack.c.h.b16 %v317
        %v350 = vunpack.c.l.b16 %v318
        %v351 = vunpack.c.h.b16 %v318
        %v352 = vpack.c.b16 %v350, %v348
        %v353 = vpack.c.b16 %v351, %v349
        %v375 = vunpack.c.l.b16 %v319
        %v376 = vunpack.c.l.b16 %v320
        %v377 = vunpack.c.l.b16 %v321
        %v378 = vunpack.c.l.b16 %v322
        %v379 = vunpack.c.l.b16 %v323
        %v380 = vunpack.c.l.b16 %v324
        %v381 = vunpack.c.l.b16 %v325
        %v382 = vunpack.c.l.b16 %v326
        %v383 = vunpack.c.l.b16 %v327
        %v384 = vunpack.c.l.b16 %v328
        %v385 = vunpack.c.l.b16 %v329
        %v386 = vunpack.c.l.b16 %v330
        %v387 = vunpack.c.l.b16 %v331
        %v388 = vunpack.c.l.b16 %v332
        %v389 = vunpack.c.l.b16 %v333
        %v390 = vunpack.c.l.b16 %v334
        %v391 = vunpack.c.l.b16 %v335
        %v392 = vunpack.c.l.b16 %v336
        %v393 = vunpack.c.l.b16 %v337
        %v394 = vunpack.c.l.b16 %v338
        %v395 = vpack.c.b16 %v376, %v375
        %v396 = vpack.c.b16 %v378, %v377
        %v397 = vpack.c.b16 %v380, %v379
        %v398 = vpack.c.b16 %v382, %v381
        %v399 = vpack.c.b16 %v384, %v383
        %v400 = vpack.c.b16 %v386, %v385
        %v401 = vpack.c.b16 %v388, %v387
        %v402 = vpack.c.b16 %v390, %v389
        %v403 = vpack.c.b16 %v392, %v391
        %v404 = vpack.c.b16 %v394, %v393
        %vm415 = vcmask 261120
        %v417 = vsel %vm415, %v353, 0
        %419 = vmatprep.subr.bf16.mxu0 0
        %420 = vmatpush1.bf16.msra.mxu0 %v395
        %421 = vmatprep.subr.bf16.mxu0 0
        %422 = vmatpush1.bf16.msra.mxu0 %v396
        %423 = vmatprep.subr.bf16.mxu0 0
        %424 = vmatpush1.bf16.msra.mxu0 %v397
        %425 = vmatprep.subr.bf16.mxu0 0
        %426 = vmatpush1.bf16.msra.mxu0 %v398
        %427 = vmatprep.subr.bf16.mxu0 0
        %428 = vmatpush1.bf16.msra.mxu0 %v399
        %429 = vmatprep.subr.bf16.mxu0 0
        %430 = vmatpush1.bf16.msra.mxu0 %v400
        %431 = vmatprep.subr.bf16.mxu0 0
        %432 = vmatpush1.bf16.msra.mxu0 %v401
        %433 = vmatprep.subr.bf16.mxu0 0
        %434 = vmatpush1.bf16.msra.mxu0 %v402
        %435 = vmatprep.subr.bf16.mxu0 0
        %436 = vmatpush1.bf16.msra.mxu0 %v403
        %437 = vmatprep.subr.bf16.mxu0 0
        %438 = vmatpush1.bf16.msra.mxu0 %v404
        %439 = vmatprep.subr.bf16.mxu0 0
        %440 = vmatpush1.bf16.msra.mxu0 0
        %441 = vmatprep.subr.bf16.mxu0 0
        %442 = vmatpush1.bf16.msra.mxu0 0
        %443 = vmatprep.subr.bf16.mxu0 0
        %444 = vmatpush1.bf16.msra.mxu0 0
        %445 = vmatprep.subr.bf16.mxu0 0
        %446 = vmatpush1.bf16.msra.mxu0 0
        %447 = vmatprep.subr.bf16.mxu0 0
        %448 = vmatpush1.bf16.msra.mxu0 0
        %449 = vmatprep.subr.bf16.mxu0 0
        %450 = vmatpush1.bf16.msra.mxu0 0
        %451 = vmatprep.mubr.bf16.mxu0 %v417
        %452 = vmatmul.mubr.bf16.gmra.mrb[0].mxu0 %v352
        %v453 = vpop.f32.mrb[0].mxu0
        %v454 = vadd.f32 %v344, %v453
        %v455 = vpop.f32.mrb[0].mxu0
        %v456 = vpop.f32.mrb[0].mxu0
        %v457 = vadd.f32 %v344, %v456
        %v458 = vpop.f32.mrb[0].mxu0
        %459 = vdwg.mxu0
        %v460 = vpack.c.bf16 %v457, %v454
        %v462 = vunpack.c.l.b16 %v460
        %v463 = vunpack.c.h.b16 %v460
        %v464 = vpack.c.b16 %v462, %v462
        %v465 = vpack.c.b16 %v463, %v463
        %468 = vst [vmem:[%s309] sm:$0xf] %v464
        %469 = vst [vmem:[%s309 + $0x4] sm:$0xf] %v465
      $region48: #{_lambda_.1} parent=43 // pred_fallthru
        _
      %p470 = scmp.eq.s32.totalorder %s312, 1
      // Predicated region
      $region49: #{_lambda_.1} parent=43 // pred_check
        %p471 = pneg %p470
      $region50: #{_lambda_.1} parent=43 // pred_check_branch
        %473 = sbr.rel (%p471) target = $region52
      $region51: #{_lambda_.1} parent=43 // pred_region
        %v474 = vld [vmem:[%s302] sm:$0xf]
        %v475 = vld [vmem:[%s302 + $0x4] sm:$0xf]
        %v476 = vld [vmem:[%s7] sm:$0xf]
        %v477 = vld [vmem:[%s7 + $0x4] sm:$0xf]
        %v478 = vld [vmem:[%s7 + $0x8] sm:$0xf]
        %v479 = vld [vmem:[%s7 + $0xc] sm:$0xf]
        %v480 = vld [vmem:[%s7 + $0x10] sm:$0xf]
        %v481 = vld [vmem:[%s7 + $0x14] sm:$0xf]
        %v482 = vld [vmem:[%s7 + $0x18] sm:$0xf]
        %v483 = vld [vmem:[%s7 + $0x1c] sm:$0xf]
        %v484 = vld [vmem:[%s7 + $0x20] sm:$0xf]
        %v485 = vld [vmem:[%s7 + $0x24] sm:$0xf]
        %v486 = vld [vmem:[%s7 + $0x28] sm:$0xf]
        %v487 = vld [vmem:[%s7 + $0x2c] sm:$0xf]
        %v488 = vld [vmem:[%s7 + $0x30] sm:$0xf]
        %v489 = vld [vmem:[%s7 + $0x34] sm:$0xf]
        %v490 = vld [vmem:[%s8] sm:$0x1]
        %v492 = vlaneseq
        %v493 = vshrl.u32 %v492, 7
        %v494 = vsub.s32 0, %v493
        %v495 = vrot.slane %v490, %v494
        %v499 = vunpack.c.l.b16 %v474
        %v500 = vunpack.c.l.b16 %v475
        %v501 = vpack.c.b16 %v500, %v499
        %v516 = vunpack.c.l.b16 %v476
        %v517 = vunpack.c.l.b16 %v477
        %v518 = vunpack.c.l.b16 %v478
        %v519 = vunpack.c.l.b16 %v479
        %v520 = vunpack.c.l.b16 %v480
        %v521 = vunpack.c.l.b16 %v481
        %v522 = vunpack.c.l.b16 %v482
        %v523 = vunpack.c.l.b16 %v483
        %v524 = vunpack.c.l.b16 %v484
        %v525 = vunpack.c.l.b16 %v485
        %v526 = vunpack.c.l.b16 %v486
        %v527 = vunpack.c.l.b16 %v487
        %v528 = vunpack.c.l.b16 %v488
        %v529 = vunpack.c.l.b16 %v489
        %v530 = vpack.c.b16 %v517, %v516
        %v531 = vpack.c.b16 %v519, %v518
        %v532 = vpack.c.b16 %v521, %v520
        %v533 = vpack.c.b16 %v523, %v522
        %v534 = vpack.c.b16 %v525, %v524
        %v535 = vpack.c.b16 %v527, %v526
        %v536 = vpack.c.b16 %v529, %v528
        %vm544 = vcmask 916480
        %v546 = vsel %vm544, %v501, 0
        %548 = vmatprep.subr.bf16.mxu0 0
        %549 = vmatpush1.bf16.msra.mxu0 %v530
        %550 = vmatprep.subr.bf16.mxu0 0
        %551 = vmatpush1.bf16.msra.mxu0 %v531
        %552 = vmatprep.subr.bf16.mxu0 0
        %553 = vmatpush1.bf16.msra.mxu0 %v532
        %554 = vmatprep.subr.bf16.mxu0 0
        %555 = vmatpush1.bf16.msra.mxu0 %v533
        %556 = vmatprep.subr.bf16.mxu0 0
        %557 = vmatpush1.bf16.msra.mxu0 %v534
        %558 = vmatprep.subr.bf16.mxu0 0
        %559 = vmatpush1.bf16.msra.mxu0 %v535
        %560 = vmatprep.subr.bf16.mxu0 0
        %561 = vmatpush1.bf16.msra.mxu0 %v536
        %562 = vmatprep.subr.bf16.mxu0 0
        %563 = vmatpush1.bf16.msra.mxu0 0
        %564 = vmatprep.subr.bf16.mxu0 0
        %565 = vmatpush1.bf16.msra.mxu0 0
        %566 = vmatprep.subr.bf16.mxu0 0
        %567 = vmatpush1.bf16.msra.mxu0 0
        %568 = vmatprep.subr.bf16.mxu0 0
        %569 = vmatpush1.bf16.msra.mxu0 0
        %570 = vmatprep.subr.bf16.mxu0 0
        %571 = vmatpush1.bf16.msra.mxu0 0
        %572 = vmatprep.subr.bf16.mxu0 0
        %573 = vmatpush1.bf16.msra.mxu0 0
        %574 = vmatprep.subr.bf16.mxu0 0
        %575 = vmatpush1.bf16.msra.mxu0 0
        %576 = vmatprep.subr.bf16.mxu0 0
        %577 = vmatpush1.bf16.msra.mxu0 0
        %578 = vmatprep.subr.bf16.mxu0 0
        %579 = vmatpush1.bf16.msra.mxu0 0
        %580 = vmatprep.mubr.bf16.mxu0 0
        %581 = vmatmul.mubr.bf16.gmra.mrb[0].mxu0 %v546
        %v582 = vpop.f32.mrb[0].mxu0
        %v583 = vadd.f32 %v495, %v582
        %v584 = vpop.f32.mrb[0].mxu0
        %v585 = vpop.f32.mrb[0].mxu0
        %v586 = vadd.f32 %v495, %v585
        %v587 = vpop.f32.mrb[0].mxu0
        %588 = vdwg.mxu0
        %v589 = vpack.c.bf16 %v586, %v583
        %v591 = vunpack.c.l.b16 %v589
        %v592 = vunpack.c.h.b16 %v589
        %v593 = vpack.c.b16 %v591, %v591
        %v594 = vpack.c.b16 %v592, %v592
        %597 = vst [vmem:[%s309] sm:$0xf] %v593
        %598 = vst [vmem:[%s309 + $0x4] sm:$0xf] %v594
      $region52: #{_lambda_.1} parent=43 // pred_fallthru
        _
      %s599 = smul.u32 2, %s34
      %p600 = scmp.lt.s32.totalorder %s599, 11
      %s601 = scalar_select %p600, %s599, 11
      %s602 = smul.addr %s601, 4
      %s603 = scalar_lea.vmem %s9, %s602
      // Predicated region
      $region53: #{_lambda_.1} parent=43 // pred_check
        %p604 = pneg %p192
      $region54: #{_lambda_.1} parent=43 // pred_check_branch
        %606 = sbr.rel (%p604) target = $region56
      $region55: #{_lambda_.1} parent=43 // pred_region
        %s607 = smul.u32 2, %s34
      $region56: #{_lambda_.1} parent=43 // pred_fallthru
        _
    $region44: #{_lambda_.1} parent=5 // pred_fallthru
      _
    %p608 = scmp.le.s32.totalorder 2, %s29
    // Predicated region
    $region57: #{_lambda_.1} parent=5 // pred_check
      %p609 = pneg %p608
    $region58: #{_lambda_.1} parent=5 // pred_check_branch
      %611 = sbr.rel (%p609) target = $region60
    $region59: #{_lambda_.1} parent=5 // pred_region
      %s612 = ssub.s32 %s29, 2
      // Predicated region
      $region61: #{_lambda_.1} parent=59 // pred_check
        %p613 = pneg %p198
      $region62: #{_lambda_.1} parent=59 // pred_check_branch
        %615 = sbr.rel (%p613) target = $region64
      $region63: #{_lambda_.1} parent=59 // pred_region
        %s616 = smul.u32 2, %s35
        %p617 = scmp.lt.s32.totalorder %s616, 11
        %s618 = scalar_select %p617, %s616, 11
        %s619 = smul.addr %s618, 4
        %s620 = scalar_lea.vmem %s9, %s619
      $region64: #{_lambda_.1} parent=59 // pred_fallthru
        _
    $region60: #{_lambda_.1} parent=5 // pred_fallthru
      _
  $region6: #{_lambda_.1} parent=0 // loop_footer
    %s33 = sadd.s32 1, %s29
  $region7: #{_lambda_.1} parent=0 // loop_footer_branch
    %28 = sbr.rel target = $region3
  $region8: #{_lambda_.1} parent=0 // loop_exit
    _

</llo_original>
